<compile_context>
chip_gen: v7x
topology: tpu7x:2x2x1
jax: 0.10.0
libtpu: 0.0.40
codegen_flags: <defaults>
</compile_context>

<pallas_src>
import functools

import jax
import jax.numpy as jnp
from jax.experimental import pallas as pl
from jax.experimental.pallas import tpu as pltpu


def _mse_partial_kernel(x_ref, c_ref, o_ref, *, tm, tiles_per_split, n_rows,
                        needs_mask):
    """Accumulate per-split (8, D) partial sums of (x - center)^2."""
    s = pl.program_id(0)          # core-parallel split of the batch
    k = pl.program_id(1)          # reduction over batch tiles inside a split

    @pl.when(k == 0)
    def _():
        o_ref[...] = jnp.zeros_like(o_ref)

    diff = x_ref[...].astype(jnp.float32) - c_ref[...].astype(jnp.float32)
    d2 = diff * diff              # (tm, D)

    if needs_mask:
        # Zero rows past the true batch size (covers both the partial last
        # tile and any fully-clamped tiles of the last split).
        tile = s * tiles_per_split + k
        row = tile * tm + jax.lax.broadcasted_iota(jnp.int32, d2.shape, 0)
        d2 = jnp.where(row < n_rows, d2, 0.0)

    # VPU add-tree over whole vreg slabs into the resident accumulator.
    o_ref[...] += d2.reshape(tm // 8, 8, d2.shape[1]).sum(axis=0)


def _round_up(v, m):
    return ((v + m - 1) // m) * m


def latent_center_regularizer(x, latent_center, *, tm=None):
    """MSE(x, latent_center): center of shape (D,) broadcast over batch (B, D)."""
    B, D = x.shape
    c = jnp.asarray(latent_center).reshape(1, D).astype(x.dtype)

    itemsize = jnp.dtype(x.dtype).itemsize
    sublane = {4: 8, 2: 16, 1: 32}.get(itemsize, 8)

    if tm is None:
        # ~2 MiB per input block (double-buffered -> ~4 MiB): well past the
        # HBM-bandwidth knee while fitting every generation's scoped VMEM.
        target_block_bytes = 2 * 1024 * 1024
        tm = max(sublane, target_block_bytes // max(1, D * itemsize))
    tm = max(sublane, _round_up(tm, sublane))
    tm = min(tm, _round_up(B, sublane))       # never bigger than (padded) batch

    n_tiles = pl.cdiv(B, tm)
    # 2-way batch split on a parallel axis: ~2x on v7x (2 TCs/chip), no-op cost
    # on single-core v5e/v6e.
    n_splits = 2 if n_tiles >= 4 else 1
    tiles_per_split = pl.cdiv(n_tiles, n_splits)
    covered_rows = n_splits * tiles_per_split * tm
    needs_mask = covered_rows != B

    if n_splits * tiles_per_split > n_tiles:
        # Last logical tile(s) of the last split are fully out of range:
        # clamp the DMA to a valid block; the in-kernel row mask zeroes it.
        def x_index_map(s, k):
            return (jnp.minimum(s * tiles_per_split + k, n_tiles - 1), 0)
    else:
        def x_index_map(s, k):
            return (s * tiles_per_split + k, 0)

    kernel = functools.partial(
        _mse_partial_kernel,
        tm=tm, tiles_per_split=tiles_per_split, n_rows=B, needs_mask=needs_mask)

    block_bytes = tm * D * itemsize
    # Double-buffered x + resident center/accumulator + headroom; cap below
    # v7x physical VMEM (64 MiB).
    vmem_limit = int(min(60 * 1024 * 1024,
                         max(32 * 1024 * 1024, 4 * block_bytes + (1 << 20))))

    partials = pl.pallas_call(
        kernel,
        out_shape=jax.ShapeDtypeStruct((n_splits, 8, D), jnp.float32),
        grid_spec=pltpu.PrefetchScalarGridSpec(
            num_scalar_prefetch=0,
            grid=(n_splits, tiles_per_split),
            in_specs=[
                pl.BlockSpec((tm, D), x_index_map),            # streamed batch tile
                pl.BlockSpec((1, D), lambda s, k: (0, 0)),     # center, resident
            ],
            # Per-split (8, D) partial-sum slab, resident across the k axis.
            out_specs=pl.BlockSpec((None, 8, D), lambda s, k: (s, 0, 0)),
        ),
        compiler_params=pltpu.CompilerParams(
            dimension_semantics=("parallel", "arbitrary"),
            vmem_limit_bytes=vmem_limit,
        ),
    )(x, c)

    # Tiny final reduction + mean in plain JAX.
    return jnp.sum(partials) / (B * D)


if __name__ == "__main__":
    key = jax.random.PRNGKey(0)
    k_x, k_c, k_x2 = jax.random.split(key, 3)

    # Small shapes consistent with a latent-space regularizer.
    B, D = 16, 128
    x = jax.random.normal(k_x, (B, D), dtype=jnp.float32)
    latent_center = jax.random.normal(k_c, (D,), dtype=jnp.float32)

    loss = latent_center_regularizer(x, latent_center)
    loss = jax.block_until_ready(loss)
    ref = jnp.mean((x - latent_center[None, :]) ** 2)
    assert jnp.allclose(loss, ref, rtol=1e-5, atol=1e-6), (loss, ref)

    # Ragged batch + multi-tile grid + 2-way split + clamp/mask path.
    B2 = 52
    x2 = jax.random.normal(k_x2, (B2, D), dtype=jnp.float32)
    loss2 = latent_center_regularizer(x2, latent_center, tm=8)
    loss2 = jax.block_until_ready(loss2)
    ref2 = jnp.mean((x2 - latent_center[None, :]) ** 2)
    assert jnp.allclose(loss2, ref2, rtol=1e-5, atol=1e-6), (loss2, ref2)

    print("KERNEL_OK")
</pallas_src>

<mosaic_0001>
module attributes {stable_mosaic.version = 11 : i64} {
  func.func @_mse_partial_kernel(%arg0: i32, %arg1: i32, %arg2: memref<16x128xf32, #tpu.memory_space<vmem>>, %arg3: memref<1x128xf32, #tpu.memory_space<vmem>>, %arg4: memref<1x8x128xf32, #tpu.memory_space<vmem>>) attributes {dimension_semantics = [#tpu.dimension_semantics<parallel>, #tpu.dimension_semantics<arbitrary>], iteration_bounds = array<i64: 1, 1>, scalar_prefetch = 0 : i64, scratch_operands = 0 : i64, tpu.core_type = #tpu.core_type<tc>, window_params = [{transform_indices = @transform_0, window_bounds = array<i64: 16, 128>}, {pipeline_mode = #tpu.pipeline_mode<synchronous>, transform_indices = @transform_1, window_bounds = array<i64: 1, 128>}, {transform_indices = @transform_2, window_bounds = array<i64: 1, 8, 128>}]} {
    %c0_i32 = arith.constant 0 : i32
    %0 = arith.cmpi eq, %arg1, %c0_i32 : i32
    %1 = arith.extui %0 : i1 to i32
    %c0_i32_0 = arith.constant 0 : i32
    %2 = arith.cmpi ne, %1, %c0_i32_0 : i32
    scf.if %2 {
      %cst_10 = arith.constant 0.000000e+00 : f32
      %16 = vector.broadcast %cst_10 : f32 to vector<8x128xf32>
      %c0_11 = arith.constant 0 : index
      %c0_12 = arith.constant 0 : index
      %c0_13 = arith.constant 0 : index
      %17 = vector.load %arg4[%c0_11, %c0_12, %c0_13] : memref<1x8x128xf32, #tpu.memory_space<vmem>>, vector<1x8x128xf32>
      %18 = vector.shape_cast %17 : vector<1x8x128xf32> to vector<8x128xf32>
      %19 = vector.shape_cast %16 : vector<8x128xf32> to vector<1x8x128xf32>
      tpu.vector_store %arg4[%c0_11, %c0_12, %c0_13], %19 {strides = array<i32>} : memref<1x8x128xf32, #tpu.memory_space<vmem>>, vector<1x8x128xf32>,
    } else {
    }
    %c0 = arith.constant 0 : index
    %c0_1 = arith.constant 0 : index
    %3 = vector.load %arg2[%c0, %c0_1] : memref<16x128xf32, #tpu.memory_space<vmem>>, vector<16x128xf32>
    %c0_2 = arith.constant 0 : index
    %c0_3 = arith.constant 0 : index
    %4 = vector.load %arg3[%c0_2, %c0_3] : memref<1x128xf32, #tpu.memory_space<vmem>>, vector<1x128xf32>
    %5 = vector.broadcast %4 : vector<1x128xf32> to vector<16x128xf32>
    %6 = arith.subf %3, %5 : vector<16x128xf32>
    %7 = arith.mulf %6, %6 : vector<16x128xf32>
    %c0_4 = arith.constant 0 : index
    %c0_5 = arith.constant 0 : index
    %c0_6 = arith.constant 0 : index
    %8 = vector.load %arg4[%c0_4, %c0_5, %c0_6] : memref<1x8x128xf32, #tpu.memory_space<vmem>>, vector<1x8x128xf32>
    %9 = vector.shape_cast %8 : vector<1x8x128xf32> to vector<8x128xf32>
    %10 = vector.shape_cast %7 : vector<16x128xf32> to vector<2x8x128xf32>
    %cst = arith.constant dense<0.000000e+00> : vector<8x128xf32>
    %11 = vector.multi_reduction <add>, %10, %cst [0] : vector<2x8x128xf32> to vector<8x128xf32>
    %12 = arith.addf %9, %11 : vector<8x128xf32>
    %c0_7 = arith.constant 0 : index
    %c0_8 = arith.constant 0 : index
    %c0_9 = arith.constant 0 : index
    %13 = vector.load %arg4[%c0_7, %c0_8, %c0_9] : memref<1x8x128xf32, #tpu.memory_space<vmem>>, vector<1x8x128xf32>
    %14 = vector.shape_cast %13 : vector<1x8x128xf32> to vector<8x128xf32>
    %15 = vector.shape_cast %12 : vector<8x128xf32> to vector<1x8x128xf32>
    tpu.vector_store %arg4[%c0_7, %c0_8, %c0_9], %15 {strides = array<i32>} : memref<1x8x128xf32, #tpu.memory_space<vmem>>, vector<1x8x128xf32>,
    return
  }
  func.func @transform_0(%arg0: i32, %arg1: i32) -> (i32, i32) {
    %c1_i32 = arith.constant 1 : i32
    %0 = arith.muli %arg0, %c1_i32 : i32
    %1 = arith.addi %0, %arg1 : i32
    %c0_i32 = arith.constant 0 : i32
    %c0_i32_0 = arith.constant 0 : i32
    return %1, %c0_i32 : i32, i32
  }
  func.func @transform_1(%arg0: i32, %arg1: i32) -> (i32, i32) {
    %c0_i32 = arith.constant 0 : i32
    %c0_i32_0 = arith.constant 0 : i32
    %c0_i32_1 = arith.constant 0 : i32
    return %c0_i32, %c0_i32_0 : i32, i32
  }
  func.func @transform_2(%arg0: i32, %arg1: i32) -> (i32, i32, i32) {
    %c0_i32 = arith.constant 0 : i32
    %c0_i32_0 = arith.constant 0 : i32
    %c0_i32_1 = arith.constant 0 : i32
    return %arg0, %c0_i32, %c0_i32_0 : i32, i32, i32
  }
}

</mosaic_0001>

<llo_original>
// kernel: tpu_custom_call.1
$region0: #{tpu_custom_call.1}
  #allocation0 [shape = 'u32[]', space=smem, size = 0x4, offset = 0x4, fixed_abs, tag = 'smem constant byte address 0x4 - core index']
  #allocation1 [shape = 'u32[144,128]{1,0:T(1,128)}', space=vmem, size = 0x12000, scoped, tag = 'internal scratch']
  %s0 = inlined_call_operand.hbm [shape: f32[16,128], index: 0, kind: input, shape index: {}]
  %s1 = inlined_call_operand.vmem [shape: f32[1,128], index: 1, kind: input, shape index: {}]
  %s2 = inlined_call_operand.hbm [shape: f32[1,8,128], index: 2, kind: output, shape index: {}]
  %s3 = sld [smem:[#allocation0]]
  $region26: #{tpu_custom_call.1} parent=0
    _
  %s5 = ssub.s32 1, %s3
  %s6 = scalar_select 0, %s5, %s3
  $region1: #{tpu_custom_call.1} parent=0
    #allocation2 [shape = 'u8[8192]{0}', space=vmem, size = 0x2000, scoped, tag = 'input window, operand 0, single buffered']
    #allocation3 [shape = 's32[1]{0}', space=sflag, size = 0x4, scoped, tag = 'scoped memory for tpu_custom_call.1']
    #allocation4 [shape = 's32[1]{0}', space=sflag, size = 0x4, scoped, tag = 'scoped memory for tpu_custom_call.1']
    #allocation5 [shape = 'u8[4096]{0}', space=vmem, size = 0x1000, scoped, tag = 'output window, operand 0, single buffered']
    %7 = vsyncpa [#allocation3], 0
    %8 = vsyncpa [#allocation4], 0
    // Predicated region
    $region2: #{tpu_custom_call.1} parent=1 // pred_check
      _
    $region3: #{tpu_custom_call.1} parent=1 // pred_check_branch
      %10 = sbr.rel (0) target = $region5
    $region4: #{tpu_custom_call.1} parent=1 // pred_region
      %s11 = sadd.s32 0, 0
      %s12 = smul.u32 2, %s11
      %s14 = ssub.s32 256, 256
      %15 = vsyncadd [#allocation3], %s14
      %s16 = smul.addr %s12, 128
      %s17 = scalar_lea.hbm %s0, %s16
      %s18 = sshll.u32 [#allocation2], 4
      %s19 = int_to_ptr.vmem [resolvable:$true] %s18
      %24 = dma.hbm_to_vmem [thread:$0]  %s17, 256, %s19, [#allocation3], 128, 128, 8
    $region5: #{tpu_custom_call.1} parent=1 // pred_fallthru
      _
    // Predicated region
    $region6: #{tpu_custom_call.1} parent=1 // pred_check
      _
    $region7: #{tpu_custom_call.1} parent=1 // pred_check_branch
      %26 = sbr.rel (0) target = $region9
    $region8: #{tpu_custom_call.1} parent=1 // pred_region
      _
    $region9: #{tpu_custom_call.1} parent=1 // pred_fallthru
      _
    // Predicated region
    $region10: #{tpu_custom_call.1} parent=1 // pred_check
      _
    $region11: #{tpu_custom_call.1} parent=1 // pred_check_branch
      %28 = sbr.rel (0) target = $region13
    $region12: #{tpu_custom_call.1} parent=1 // pred_region
      %29 = dma.done [#allocation3], 256
    $region13: #{tpu_custom_call.1} parent=1 // pred_fallthru
      _
    %s30 = sadd.s32 0, 0
    %s31 = smul.u32 2, %s30
    %p32 = scmp.eq.s32.totalorder 0, 0
    // Predicated region
    $region14: #{tpu_custom_call.1} parent=1 // pred_check
      %p33 = pneg %p32
    $region15: #{tpu_custom_call.1} parent=1 // pred_check_branch
      %35 = sbr.rel (%p33) target = $region17
    $region16: #{tpu_custom_call.1} parent=1 // pred_region
      %36 = vst [vmem:[#allocation5] sm:$0xff] 0.0
    $region17: #{tpu_custom_call.1} parent=1 // pred_fallthru
      _
    %v37 = vld [vmem:[#allocation2] sm:$0xff]
    %v38 = vld [vmem:[#allocation2 + $0x8] sm:$0xff]
    %v39 = vld [vmem:[%s1] sm:$0x1]
    %v41 = vlaneseq
    %v42 = vshrl.u32 %v41, 7
    %v43 = vsub.s32 0, %v42
    %v44 = vrot.slane %v39, %v43
    %v46 = vsub.f32 %v37, %v44
    %v47 = vsub.f32 %v38, %v44
    %v48 = vmul.f32 %v46, %v46
    %v49 = vmul.f32 %v47, %v47
    %v50 = vld [vmem:[#allocation5] sm:$0xff]
    %v51 = vadd.f32 %v48, %v49
    %v52 = vadd.f32 %v50, %v51
    %53 = vst [vmem:[#allocation5] sm:$0xff] %v52
    // Predicated region
    $region18: #{tpu_custom_call.1} parent=1 // pred_check
      _
    $region19: #{tpu_custom_call.1} parent=1 // pred_check_branch
      %55 = sbr.rel (0) target = $region21
    $region20: #{tpu_custom_call.1} parent=1 // pred_region
      %s57 = ssub.s32 128, 128
      %58 = vsyncadd [#allocation4], %s57
      %s60 = sshll.u32 [#allocation5], 4
      %s61 = int_to_ptr.vmem [resolvable:$true] %s60
      %63 = dma.vmem_to_hbm [thread:$0]  %s61, 128, %s2, [#allocation4]
    $region21: #{tpu_custom_call.1} parent=1 // pred_fallthru
      _
    // Predicated region
    $region22: #{tpu_custom_call.1} parent=1 // pred_check
      _
    $region23: #{tpu_custom_call.1} parent=1 // pred_check_branch
      %65 = sbr.rel (0) target = $region25
    $region24: #{tpu_custom_call.1} parent=1 // pred_region
      %66 = dma.done [#allocation4], 128
    $region25: #{tpu_custom_call.1} parent=1 // pred_fallthru
      _
    %67 = vsyncpa [#allocation3], 1
    %68 = vsyncpa [#allocation4], 1

</llo_original>
